<compile_context>
chip_gen: v7x
topology: tpu7x:2x2x1
jax: 0.10.0
libtpu: 0.0.40
codegen_flags: <defaults>
</compile_context>

<pallas_src>
import functools

import jax
import jax.numpy as jnp
from jax.experimental import pallas as pl
from jax.experimental.pallas import tpu as pltpu


def _cdiv(a, b):
    return -(-a // b)


def _round_up(x, m):
    return _cdiv(x, m) * m


def _tsp_kernel(x_ref, out_ref, sum_acc, sumsq_acc, *, n_frames, mask_frames):
    """Streaming temporal statistics over one (rows, frames) tile.

    x_ref     : (br, bt)   input tile, original dtype.
    out_ref   : (br, 2)    output [mean | unbiased var], written at last step.
    sum_acc   : (br, 128)  f32 scratch, lane-parallel running sum.
    sumsq_acc : (br, 128)  f32 scratch, lane-parallel running sum of squares.
    """
    k = pl.program_id(1)

    @pl.when(k == 0)
    def _():
        sum_acc[...] = jnp.zeros_like(sum_acc)
        sumsq_acc[...] = jnp.zeros_like(sumsq_acc)

    br, bt = x_ref.shape
    full_chunks = bt // 128
    rem = bt % 128

    if mask_frames:
        # Global frame index of lane 0 of this tile (only reachable when the
        # frame axis is tiled, i.e. bt is a fixed multiple of 128).
        base = k * bt
        lane = jax.lax.broadcasted_iota(jnp.int32, (br, 128), 1)

    # Lane-parallel partial accumulation: pure vreg adds (VALU) in the hot
    # loop; the cross-lane (XLU) reduce happens once, in the finalize block.
    if full_chunks > 0:
        s = sum_acc[...]
        q = sumsq_acc[...]
        for c in range(full_chunks):
            xi = x_ref[:, c * 128:(c + 1) * 128].astype(jnp.float32)
            if mask_frames:
                valid = (base + (c * 128) + lane) < n_frames
                xi = jnp.where(valid, xi, 0.0)
            s = s + xi
            q = q + xi * xi
        sum_acc[...] = s
        sumsq_acc[...] = q

    if rem:
        # Ragged lane tail (< 128 wide). Only occurs when bt == T (single
        # frame step), so no out-of-range masking is needed here.
        xt = x_ref[:, full_chunks * 128:bt].astype(jnp.float32)
        sum_acc[:, :rem] = sum_acc[:, :rem] + xt
        sumsq_acc[:, :rem] = sumsq_acc[:, :rem] + xt * xt

    @pl.when(k == pl.num_programs(1) - 1)
    def _():
        t = jnp.float32(n_frames)
        total = jnp.sum(sum_acc[...], axis=-1, keepdims=True)       # (br, 1)
        total_sq = jnp.sum(sumsq_acc[...], axis=-1, keepdims=True)  # (br, 1)
        mean = total / t
        # Unbiased variance (torch.var default, correction=1). n_frames == 1
        # yields nan/inf, matching torch.var behavior.
        # TODO(synk): the sum-of-squares formula can cancel catastrophically
        # when |mean| >> std over very long T; a Welford-style per-chunk
        # combine would be numerically safer.
        var = (total_sq - total * mean) / (t - 1.0)
        out_ref[:, 0:1] = mean.astype(out_ref.dtype)
        out_ref[:, 1:2] = var.astype(out_ref.dtype)


def temporal_statistics_pooling(x, *, block_rows=256, block_frames=4096):
    """x: (B, C, T) -> (B, 2*C) = [mean over T | unbiased var over T]."""
    B, C, T = x.shape
    R = B * C
    xf = x.reshape(R, T)

    itemsize = jnp.dtype(x.dtype).itemsize
    sublane = {4: 8, 2: 16, 1: 32}.get(itemsize, 8)

    # ---- Row (B*C) tiling: sublane axis. Blocks are a multiple of the
    # dtype-native sublane tile (or equal the full axis). Small-R inputs are
    # split into >=2 row tiles so both v7x TensorCores get work. ----
    if R <= sublane:
        br = R
    elif R <= block_rows:
        br = _round_up(_cdiv(R, 2), sublane)
    else:
        br = _round_up(block_rows, sublane)
    grid_r = _cdiv(R, br)

    # ---- Frame (T) tiling: lane axis. Either one full-T block, or fixed
    # `block_frames`-wide blocks with an in-kernel mask on the ragged tail
    # (no jnp.pad, no tiny-divisor fallback). ----
    block_frames = max(128, (block_frames // 128) * 128)
    if T <= block_frames:
        bt = T
        grid_k = 1
        mask_frames = False
    else:
        bt = block_frames
        grid_k = _cdiv(T, bt)
        mask_frames = (T % bt) != 0

    kernel = functools.partial(_tsp_kernel, n_frames=T, mask_frames=mask_frames)

    # VMEM budget from actual buffer sizes: double-buffered input tile +
    # f32 accumulators + output tile + headroom. Raised above v5e's 16 MiB
    # scoped default, capped for v7x's 64 MiB physical VMEM.
    needed = (2 * br * bt * itemsize          # double-buffered input tile
              + 2 * br * 128 * 4              # f32 accumulators
              + 2 * br * 2 * itemsize         # output tile (double-buffered)
              + (4 << 20))                    # headroom for DMA/metadata
    vmem_limit = int(min(max(needed, 32 << 20), 64 << 20))

    cost = pl.CostEstimate(
        flops=3 * R * T,
        transcendentals=0,
        bytes_accessed=R * T * itemsize + 2 * R * itemsize,
    )

    out = pl.pallas_call(
        kernel,
        out_shape=jax.ShapeDtypeStruct((R, 2), x.dtype),
        grid_spec=pltpu.PrefetchScalarGridSpec(
            num_scalar_prefetch=0,
            grid=(grid_r, grid_k),
            in_specs=[pl.BlockSpec((br, bt), lambda i, k: (i, k))],
            out_specs=pl.BlockSpec((br, 2), lambda i, k: (i, 0)),
            scratch_shapes=[
                pltpu.VMEM((br, 128), jnp.float32),
                pltpu.VMEM((br, 128), jnp.float32),
            ],
        ),
        compiler_params=pltpu.CompilerParams(
            dimension_semantics=("parallel", "arbitrary"),
            vmem_limit_bytes=vmem_limit,
        ),
        cost_estimate=cost,
    )(xf)

    mean = out[:, 0].reshape(B, C)
    var = out[:, 1].reshape(B, C)
    return jnp.concatenate([mean, var], axis=1)


def _reference(x):
    """Pure-JAX reference mirroring the PyTorch module."""
    mean = jnp.mean(x, axis=2)
    var = jnp.var(x, axis=2, ddof=1)  # torch.var is unbiased by default
    return jnp.concatenate([mean, var], axis=1)


if __name__ == "__main__":
    key = jax.random.PRNGKey(0)
    k1, k2, k3 = jax.random.split(key, 3)

    # 1) Small deterministic example matching the module: (batch, channels, frames).
    x = jax.random.normal(k1, (2, 4, 16), dtype=jnp.float32)
    out = jax.block_until_ready(temporal_statistics_pooling(x))
    ref = _reference(x)
    assert out.shape == (2, 8), out.shape
    assert jnp.allclose(out, ref, atol=1e-5, rtol=1e-4), (out, ref)

    # 2) Forced-small tiles: multi-step frame streaming with a ragged frame
    #    tail (400 % 128 != 0 -> in-kernel lane mask) and a partial last row
    #    tile (120 % 16 != 0 -> masked output writeback).
    x2 = jax.random.normal(k2, (3, 40, 400), dtype=jnp.float32)
    out2 = jax.block_until_ready(
        temporal_statistics_pooling(x2, block_rows=16, block_frames=128))
    ref2 = _reference(x2)
    assert out2.shape == (3, 80), out2.shape
    assert jnp.allclose(out2, ref2, atol=1e-4, rtol=1e-4), (out2, ref2)

    # 3) bf16 input: dtype-native sublane rounding (16), 2-way row split for
    #    v7x, and a ragged (<128) lane tail inside a single frame step.
    x3 = jax.random.normal(k3, (2, 24, 200), dtype=jnp.float32).astype(jnp.bfloat16)
    out3 = jax.block_until_ready(temporal_statistics_pooling(x3))
    ref3 = _reference(x3.astype(jnp.float32)).astype(jnp.bfloat16)
    assert out3.shape == (2, 48), out3.shape
    assert jnp.allclose(out3.astype(jnp.float32), ref3.astype(jnp.float32),
                        atol=2e-2, rtol=2e-2), (out3, ref3)

    print("KERNEL_OK")
</pallas_src>

<mosaic_0001>
module attributes {stable_mosaic.version = 11 : i64} {
  func.func @_tsp_kernel(%arg0: i32, %arg1: i32, %arg2: memref<8x16xf32, #tpu.memory_space<vmem>>, %arg3: memref<8x2xf32, #tpu.memory_space<vmem>>, %arg4: memref<8x128xf32, #tpu.memory_space<vmem>>, %arg5: memref<8x128xf32, #tpu.memory_space<vmem>>) attributes {dimension_semantics = [#tpu.dimension_semantics<parallel>, #tpu.dimension_semantics<arbitrary>], iteration_bounds = array<i64: 1, 1>, scalar_prefetch = 0 : i64, scratch_operands = 2 : i64, tpu.core_type = #tpu.core_type<tc>, window_params = [{transform_indices = @transform_0, window_bounds = array<i64: 8, 16>}, {transform_indices = @transform_1, window_bounds = array<i64: 8, 2>}]} {
    %c0_i32 = arith.constant 0 : i32
    %0 = arith.cmpi eq, %arg1, %c0_i32 : i32
    %1 = arith.extui %0 : i1 to i32
    %c0_i32_0 = arith.constant 0 : i32
    %2 = arith.cmpi ne, %1, %c0_i32_0 : i32
    scf.if %2 {
      %cst = arith.constant 0.000000e+00 : f32
      %14 = vector.broadcast %cst : f32 to vector<8x128xf32>
      %c0_12 = arith.constant 0 : index
      %c0_13 = arith.constant 0 : index
      %15 = vector.load %arg4[%c0_12, %c0_13] : memref<8x128xf32, #tpu.memory_space<vmem>>, vector<8x128xf32>
      tpu.vector_store %arg4[%c0_12, %c0_13], %14 {strides = array<i32>} : memref<8x128xf32, #tpu.memory_space<vmem>>, vector<8x128xf32>,
      %cst_14 = arith.constant 0.000000e+00 : f32
      %16 = vector.broadcast %cst_14 : f32 to vector<8x128xf32>
      %c0_15 = arith.constant 0 : index
      %c0_16 = arith.constant 0 : index
      %17 = vector.load %arg5[%c0_15, %c0_16] : memref<8x128xf32, #tpu.memory_space<vmem>>, vector<8x128xf32>
      tpu.vector_store %arg5[%c0_15, %c0_16], %16 {strides = array<i32>} : memref<8x128xf32, #tpu.memory_space<vmem>>, vector<8x128xf32>,
    } else {
    }
    %c0 = arith.constant 0 : index
    %c0_1 = arith.constant 0 : index
    %3 = vector.load %arg2[%c0, %c0_1] : memref<8x16xf32, #tpu.memory_space<vmem>>, vector<8x16xf32>
    %c0_2 = arith.constant 0 : index
    %c0_3 = arith.constant 0 : index
    %4 = vector.load %arg4[%c0_2, %c0_3] : memref<8x128xf32, #tpu.memory_space<vmem>>, vector<8x16xf32>
    %5 = arith.addf %4, %3 : vector<8x16xf32>
    %c0_4 = arith.constant 0 : index
    %c0_5 = arith.constant 0 : index
    %6 = vector.load %arg4[%c0_4, %c0_5] : memref<8x128xf32, #tpu.memory_space<vmem>>, vector<8x16xf32>
    tpu.vector_store %arg4[%c0_4, %c0_5], %5 {strides = array<i32>} : memref<8x128xf32, #tpu.memory_space<vmem>>, vector<8x16xf32>,
    %c0_6 = arith.constant 0 : index
    %c0_7 = arith.constant 0 : index
    %7 = vector.load %arg5[%c0_6, %c0_7] : memref<8x128xf32, #tpu.memory_space<vmem>>, vector<8x16xf32>
    %8 = arith.mulf %3, %3 : vector<8x16xf32>
    %9 = arith.addf %7, %8 : vector<8x16xf32>
    %c0_8 = arith.constant 0 : index
    %c0_9 = arith.constant 0 : index
    %10 = vector.load %arg5[%c0_8, %c0_9] : memref<8x128xf32, #tpu.memory_space<vmem>>, vector<8x16xf32>
    tpu.vector_store %arg5[%c0_8, %c0_9], %9 {strides = array<i32>} : memref<8x128xf32, #tpu.memory_space<vmem>>, vector<8x16xf32>,
    %c0_i32_10 = arith.constant 0 : i32
    %11 = arith.cmpi eq, %arg1, %c0_i32_10 : i32
    %12 = arith.extui %11 : i1 to i32
    %c0_i32_11 = arith.constant 0 : i32
    %13 = arith.cmpi ne, %12, %c0_i32_11 : i32
    scf.if %13 {
      %c0_12 = arith.constant 0 : index
      %c0_13 = arith.constant 0 : index
      %14 = vector.load %arg4[%c0_12, %c0_13] : memref<8x128xf32, #tpu.memory_space<vmem>>, vector<8x128xf32>
      %cst = arith.constant dense<0.000000e+00> : vector<8xf32>
      %15 = vector.multi_reduction <add>, %14, %cst [1] : vector<8x128xf32> to vector<8xf32>
      %16 = vector.shape_cast %15 : vector<8xf32> to vector<8x1xf32>
      %c0_14 = arith.constant 0 : index
      %c0_15 = arith.constant 0 : index
      %17 = vector.load %arg5[%c0_14, %c0_15] : memref<8x128xf32, #tpu.memory_space<vmem>>, vector<8x128xf32>
      %cst_16 = arith.constant dense<0.000000e+00> : vector<8xf32>
      %18 = vector.multi_reduction <add>, %17, %cst_16 [1] : vector<8x128xf32> to vector<8xf32>
      %19 = vector.shape_cast %18 : vector<8xf32> to vector<8x1xf32>
      %cst_17 = arith.constant 1.600000e+01 : f32
      %20 = vector.broadcast %cst_17 : f32 to vector<8x1xf32>
      %21 = arith.divf %16, %20 : vector<8x1xf32>
      %22 = arith.mulf %16, %21 : vector<8x1xf32>
      %23 = arith.subf %19, %22 : vector<8x1xf32>
      %cst_18 = arith.constant 1.600000e+01 : f32
      %cst_19 = arith.constant 1.000000e+00 : f32
      %24 = arith.subf %cst_18, %cst_19 : f32
      %25 = vector.broadcast %24 : f32 to vector<8x1xf32>
      %26 = arith.divf %23, %25 : vector<8x1xf32>
      %c0_20 = arith.constant 0 : index
      %c0_21 = arith.constant 0 : index
      %27 = vector.load %arg3[%c0_20, %c0_21] : memref<8x2xf32, #tpu.memory_space<vmem>>, vector<8x1xf32>
      tpu.vector_store %arg3[%c0_20, %c0_21], %21 {strides = array<i32>} : memref<8x2xf32, #tpu.memory_space<vmem>>, vector<8x1xf32>,
      %c0_22 = arith.constant 0 : index
      %c1 = arith.constant 1 : index
      %28 = vector.load %arg3[%c0_22, %c1] : memref<8x2xf32, #tpu.memory_space<vmem>>, vector<8x1xf32>
      tpu.vector_store %arg3[%c0_22, %c1], %26 {strides = array<i32>} : memref<8x2xf32, #tpu.memory_space<vmem>>, vector<8x1xf32>,
    } else {
    }
    return
  }
  func.func @transform_0(%arg0: i32, %arg1: i32) -> (i32, i32) {
    %c0_i32 = arith.constant 0 : i32
    return %arg0, %arg1 : i32, i32
  }
  func.func @transform_1(%arg0: i32, %arg1: i32) -> (i32, i32) {
    %c0_i32 = arith.constant 0 : i32
    %c0_i32_0 = arith.constant 0 : i32
    return %arg0, %c0_i32 : i32, i32
  }
}

</mosaic_0001>

<llo_original>
// kernel: tpu_custom_call.1
$region0: #{tpu_custom_call.1}
  #allocation0 [shape = 'u32[]', space=smem, size = 0x4, offset = 0x4, fixed_abs, tag = 'smem constant byte address 0x4 - core index']
  #allocation1 [shape = 'u32[144,128]{1,0:T(1,128)}', space=vmem, size = 0x12000, scoped, tag = 'internal scratch']
  #allocation2 [shape = 'f32[8,128]{1,0:T(8,128)}', space=vmem, size = 0x1000, scoped, tag = 'scratch operand']
  #allocation3 [shape = 'f32[8,128]{1,0:T(8,128)}', space=vmem, size = 0x1000, scoped, tag = 'scratch operand']
  %s0 = inlined_call_operand.hbm [shape: f32[8,16], index: 0, kind: input, shape index: {}]
  %s1 = inlined_call_operand.vmem [shape: f32[8,2], index: 1, kind: output, shape index: {}]
  %s2 = sld [smem:[#allocation0]]
  $region26: #{tpu_custom_call.1} parent=0
    _
  %s4 = ssub.s32 1, %s2
  %s5 = scalar_select 0, %s4, %s2
  $region1: #{tpu_custom_call.1} parent=0
    #allocation4 [shape = 'u8[4096]{0}', space=vmem, size = 0x1000, scoped, tag = 'input window, operand 0, single buffered']
    #allocation5 [shape = 's32[1]{0}', space=sflag, size = 0x4, scoped, tag = 'scoped memory for tpu_custom_call.1']
    %6 = vsyncpa [#allocation5], 0
    // Predicated region
    $region2: #{tpu_custom_call.1} parent=1 // pred_check
      _
    $region3: #{tpu_custom_call.1} parent=1 // pred_check_branch
      %8 = sbr.rel (0) target = $region5
    $region4: #{tpu_custom_call.1} parent=1 // pred_region
      %s10 = ssub.s32 128, 128
      %11 = vsyncadd [#allocation5], %s10
      %s13 = sshll.u32 [#allocation4], 4
      %s14 = int_to_ptr.vmem [resolvable:$true] %s13
      %16 = dma.hbm_to_vmem [thread:$0]  %s0, 128, %s14, [#allocation5]
    $region5: #{tpu_custom_call.1} parent=1 // pred_fallthru
      _
    // Predicated region
    $region6: #{tpu_custom_call.1} parent=1 // pred_check
      _
    $region7: #{tpu_custom_call.1} parent=1 // pred_check_branch
      %18 = sbr.rel (0) target = $region9
    $region8: #{tpu_custom_call.1} parent=1 // pred_region
      %19 = dma.done [#allocation5], 128
    $region9: #{tpu_custom_call.1} parent=1 // pred_fallthru
      _
    %p20 = scmp.eq.s32.totalorder 0, 0
    // Predicated region
    $region10: #{tpu_custom_call.1} parent=1 // pred_check
      %p21 = pneg %p20
    $region11: #{tpu_custom_call.1} parent=1 // pred_check_branch
      %23 = sbr.rel (%p21) target = $region13
    $region12: #{tpu_custom_call.1} parent=1 // pred_region
      %24 = vst [vmem:[#allocation2] sm:$0xff] 0.0
      %25 = vst [vmem:[#allocation3] sm:$0xff] 0.0
    $region13: #{tpu_custom_call.1} parent=1 // pred_fallthru
      _
    %v26 = vld [vmem:[#allocation4] sm:$0xff]
    %v27 = vld [vmem:[#allocation2] sm:$0xff]
    %v28 = vadd.f32 %v27, %v26
    %vm29 = vcmask 130048
    %30 = vst.msk [vmem:[#allocation2] sm:$0xff] %vm29, %v28
    %v31 = vld [vmem:[#allocation3] sm:$0xff]
    %v32 = vmul.f32 %v26, %v26
    %v33 = vadd.f32 %v31, %v32
    %34 = vst.msk [vmem:[#allocation3] sm:$0xff] %vm29, %v33
    // Predicated region
    $region14: #{tpu_custom_call.1} parent=1 // pred_check
      %p35 = pneg %p20
    $region15: #{tpu_custom_call.1} parent=1 // pred_check_branch
      %37 = sbr.rel (%p35) target = $region17
    $region16: #{tpu_custom_call.1} parent=1 // pred_region
      %v38 = vld [vmem:[#allocation2] sm:$0xff]
      %39 = vadd.xlane.f32.xlu0 %v38
      %v40 = vpop.xlane.xlu0 %39
      %v41 = vld [vmem:[#allocation3] sm:$0xff]
      %42 = vadd.xlane.f32.xlu0 %v41
      %v43 = vpop.xlane.xlu0 %42
      %v44 = vrcp.pop 16.0
      %v45 = vmul.f32 %v40, %v44
      %v46 = vmul.f32 %v40, %v45
      %v47 = vsub.f32 %v43, %v46
      %v48 = vrcp.pop 15.0
      %v49 = vmul.f32 %v47, %v48
      %vm50 = vcmask 7168
      %51 = vst.msk [vmem:[%s1] sm:$0xff] %vm50, %v45
      %vm52 = vcmask 15368
      %53 = vst.msk [vmem:[%s1] sm:$0xff] %vm52, %v49
    $region17: #{tpu_custom_call.1} parent=1 // pred_fallthru
      _
    // Predicated region
    $region18: #{tpu_custom_call.1} parent=1 // pred_check
      _
    $region19: #{tpu_custom_call.1} parent=1 // pred_check_branch
      %55 = sbr.rel (0) target = $region21
    $region20: #{tpu_custom_call.1} parent=1 // pred_region
      _
    $region21: #{tpu_custom_call.1} parent=1 // pred_fallthru
      _
    // Predicated region
    $region22: #{tpu_custom_call.1} parent=1 // pred_check
      _
    $region23: #{tpu_custom_call.1} parent=1 // pred_check_branch
      %57 = sbr.rel (0) target = $region25
    $region24: #{tpu_custom_call.1} parent=1 // pred_region
      _
    $region25: #{tpu_custom_call.1} parent=1 // pred_fallthru
      _
    %58 = vsyncpa [#allocation5], 1

</llo_original>
